<compile_context>
chip_gen: v5e
topology: v5e:2x2
jax: 0.10.0
libtpu: 0.0.40
codegen_flags: <defaults>
</compile_context>

<pallas_src>
import jax
import jax.numpy as jnp
from jax.experimental import pallas as pl
from jax.experimental.pallas import tpu as pltpu


def scale_block_kernel(x_ref, w1_ref, b1_ref, w2_ref, b2_ref, w3_ref, b3_ref, o_ref):
    # Three MXU matmuls (bf16 inputs, f32 accumulate) + VPU relu.
    # `scale` is pre-folded into w3/b3 by the wrapper.
    x = x_ref[...].astype(jnp.bfloat16)
    h = jnp.dot(x, w1_ref[...], preferred_element_type=jnp.float32) + b1_ref[...]
    h = jnp.maximum(h, 0.0).astype(jnp.bfloat16)               # relu(fc1(x))
    h = jnp.dot(h, w2_ref[...], preferred_element_type=jnp.float32) + b2_ref[...]
    h = jnp.maximum(h, 0.0).astype(jnp.bfloat16)               # relu(fc2(.))
    o = jnp.dot(h, w3_ref[...], preferred_element_type=jnp.float32) + b3_ref[...]
    o_ref[...] = o.astype(o_ref.dtype)                         # fc3(.) * scale


def _round_up(n, m):
    return ((n + m - 1) // m) * m


def _pad2d(a, rows, cols):
    r, c = a.shape
    return jnp.pad(a, ((0, rows - r), (0, cols - c)))


def _num_tensorcores(default=2):
    """Best-effort TensorCores-per-chip query; 2 is a safe default everywhere
    (at worst one extra ~0.35us grid step on single-core chips)."""
    try:
        info = pltpu.get_tpu_info()
        for attr in ("num_cores", "core_count", "tensorcore_count", "num_tensorcores"):
            v = getattr(info, attr, None)
            if isinstance(v, int) and v > 0:
                return v
    except Exception:
        pass
    return default


def _vmem_cap_bytes():
    """~80% of physical VMEM for this generation; conservative fallback that is
    safe on v7x (64 MiB physical)."""
    try:
        cap = int(pltpu.get_tpu_info().vmem_capacity_bytes)
        if cap > 0:
            return int(cap * 0.8)
    except Exception:
        pass
    return 48 << 20


def scale_block(x, w1, b1, w2, b2, w3, b3, scale, *,
                block_rows=1024, feature_multiple=128,
                weight_dtype=jnp.bfloat16, out_dtype=None):
    """ScaleBlock forward.

    x:  (B, input_dim)   -- f32 or bf16 (bf16 halves input DMA traffic)
    w1: (hidden_dim, input_dim),  b1: (hidden_dim,)     -- nn.Linear layout
    w2: (hidden_dim, hidden_dim), b2: (hidden_dim,)
    w3: (input_dim, hidden_dim),  b3: (input_dim,)
    scale: (input_dim,)
    Returns (B, input_dim) in `out_dtype` (defaults to x.dtype).
    """
    B, Din = x.shape
    H = w1.shape[0]
    out_dtype = x.dtype if out_dtype is None else out_dtype
    f32 = jnp.float32

    # Lane-dense padded feature dims.
    Din_p = _round_up(Din, feature_multiple)
    H_p = _round_up(H, feature_multiple)

    # Batch tiling: enough tiles to (a) respect block_rows and (b) give every
    # TensorCore at least one tile when B is non-trivial, then size TM so the
    # last tile isn't mostly zero padding.
    num_cores = _num_tensorcores()
    n_tiles = max(pl.cdiv(B, block_rows),
                  num_cores if B >= 8 * num_cores else 1)
    TM = _round_up(pl.cdiv(B, n_tiles), 8)
    B_p = _round_up(B, TM)
    grid = (B_p // TM,)

    # --- Host-side weight preprocessing (one-time) -------------------------
    x_p = _pad2d(x, B_p, Din_p)                        # keep caller's dtype
    # Fold the learned per-feature scale into fc3:
    #   (h @ W3.T + b3) * scale == h @ (W3 * scale[:, None]).T + b3 * scale
    w3_eff = w3.astype(f32) * scale.astype(f32)[:, None]
    b3_eff = b3.astype(f32) * scale.astype(f32)
    # nn.Linear weights are (out, in): transpose to (in, out) so the kernel
    # computes y = x @ W + b; zero-pad, then cast to weight_dtype.
    w1_p = _pad2d(w1.T.astype(f32), Din_p, H_p).astype(weight_dtype)
    w2_p = _pad2d(w2.T.astype(f32), H_p, H_p).astype(weight_dtype)
    w3_p = _pad2d(w3_eff.T, H_p, Din_p).astype(weight_dtype)
    b1_p = _pad2d(b1.reshape(1, -1).astype(f32), 1, H_p)
    b2_p = _pad2d(b2.reshape(1, -1).astype(f32), 1, H_p)
    b3_p = _pad2d(b3_eff.reshape(1, -1), 1, Din_p)

    # --- VMEM budget --------------------------------------------------------
    # x/out tiles are double-buffered by the pipeline; constant-index blocks
    # use the default pipeline mode, so count them double-buffered too.
    x_bytes = jnp.dtype(x.dtype).itemsize
    o_bytes = jnp.dtype(out_dtype).itemsize
    w_bytes = jnp.dtype(weight_dtype).itemsize
    vmem_bytes = (
        2 * TM * Din_p * x_bytes                              # x tiles
        + 2 * TM * Din_p * o_bytes                            # out tiles
        + 2 * (Din_p * H_p + H_p * H_p + H_p * Din_p) * w_bytes  # weights
        + 2 * (2 * H_p + Din_p) * 4                           # biases (f32)
        + 2 * TM * H_p * 4                                    # hidden activation
    )
    vmem_limit = int(max(16 << 20, min(vmem_bytes + (4 << 20), _vmem_cap_bytes())))

    batch_spec = lambda shape: pl.BlockSpec(shape, lambda i: (i, 0))
    const_spec = lambda shape: pl.BlockSpec(shape, lambda i: (0, 0))

    out_p = pl.pallas_call(
        scale_block_kernel,
        out_shape=jax.ShapeDtypeStruct((B_p, Din_p), out_dtype),
        grid=grid,
        in_specs=[
            batch_spec((TM, Din_p)),    # x
            const_spec((Din_p, H_p)),   # w1 (in, hidden)
            const_spec((1, H_p)),       # b1
            const_spec((H_p, H_p)),     # w2
            const_spec((1, H_p)),       # b2
            const_spec((H_p, Din_p)),   # w3 (scale folded in)
            const_spec((1, Din_p)),     # b3 (scale folded in)
        ],
        out_specs=batch_spec((TM, Din_p)),
        compiler_params=pltpu.CompilerParams(
            dimension_semantics=("parallel",),
            vmem_limit_bytes=vmem_limit),
    )(x_p, w1_p, b1_p, w2_p, b2_p, w3_p, b3_p)

    return out_p[:B, :Din]


def reference_f32(x, w1, b1, w2, b2, w3, b3, scale):
    h = jnp.maximum(x @ w1.T + b1, 0.0)
    h = jnp.maximum(h @ w2.T + b2, 0.0)
    return (h @ w3.T + b3) * scale


def reference_bf16(x, w1, b1, w2, b2, w3, b3, scale):
    # Mirrors the kernel's numerics: scale folded into W3/b3 in f32, weights
    # and matmul inputs bf16, f32 accumulation, f32 bias / relu.
    bf = lambda a: a.astype(jnp.bfloat16)
    w3_eff = w3 * scale[:, None]
    b3_eff = b3 * scale
    h = jnp.dot(bf(x), bf(w1).T, preferred_element_type=jnp.float32) + b1
    h = jnp.maximum(h, 0.0)
    h = jnp.dot(bf(h), bf(w2).T, preferred_element_type=jnp.float32) + b2
    h = jnp.maximum(h, 0.0)
    return jnp.dot(bf(h), bf(w3_eff).T, preferred_element_type=jnp.float32) + b3_eff


if __name__ == "__main__":
    key = jax.random.PRNGKey(0)
    input_dim, hidden_dim = 32, 32

    ks = jax.random.split(key, 8)
    # nn.Linear layout: weight (out_features, in_features), bias (out_features,)
    w1 = jax.random.normal(ks[1], (hidden_dim, input_dim), jnp.float32) * 0.1
    b1 = jax.random.normal(ks[2], (hidden_dim,), jnp.float32) * 0.1
    w2 = jax.random.normal(ks[3], (hidden_dim, hidden_dim), jnp.float32) * 0.1
    b2 = jax.random.normal(ks[4], (hidden_dim,), jnp.float32) * 0.1
    w3 = jax.random.normal(ks[5], (input_dim, hidden_dim), jnp.float32) * 0.1
    b3 = jax.random.normal(ks[6], (input_dim,), jnp.float32) * 0.1
    scale = jax.random.normal(ks[7], (input_dim,), jnp.float32)  # init.normal_

    for B in (8, 300):  # small case (grid=1) and multi-tile case (grid>1, padding)
        x = jax.random.normal(ks[0], (B, input_dim), jnp.float32)

        out = scale_block(x, w1, b1, w2, b2, w3, b3, scale)
        out = jax.block_until_ready(out)
        assert out.shape == (B, input_dim)

        # Kernel wiring/padding/fold check vs a reference with matching bf16 numerics.
        ref_b = reference_bf16(x, w1, b1, w2, b2, w3, b3, scale)
        assert jnp.allclose(out, ref_b, atol=5e-3, rtol=5e-3), \
            f"B={B}: mismatch vs bf16 reference"

        # Module-semantics check vs full-f32 reference (loose tol: bf16 MXU inputs).
        ref_f = reference_f32(x, w1, b1, w2, b2, w3, b3, scale)
        assert jnp.allclose(out, ref_f, atol=5e-2, rtol=5e-2), \
            f"B={B}: mismatch vs f32 reference"

    print("KERNEL_OK")
</pallas_src>

<mosaic_0001>
module attributes {stable_mosaic.version = 11 : i64} {
  func.func @scale_block_kernel(%arg0: i32, %arg1: memref<8x128xf32, #tpu.memory_space<vmem>>, %arg2: memref<128x128xbf16, #tpu.memory_space<vmem>>, %arg3: memref<1x128xf32, #tpu.memory_space<vmem>>, %arg4: memref<128x128xbf16, #tpu.memory_space<vmem>>, %arg5: memref<1x128xf32, #tpu.memory_space<vmem>>, %arg6: memref<128x128xbf16, #tpu.memory_space<vmem>>, %arg7: memref<1x128xf32, #tpu.memory_space<vmem>>, %arg8: memref<8x128xf32, #tpu.memory_space<vmem>>) attributes {dimension_semantics = [#tpu.dimension_semantics<parallel>], iteration_bounds = array<i64: 1>, scalar_prefetch = 0 : i64, scratch_operands = 0 : i64, tpu.core_type = #tpu.core_type<tc>, window_params = [{transform_indices = @transform_0, window_bounds = array<i64: 8, 128>}, {pipeline_mode = #tpu.pipeline_mode<synchronous>, transform_indices = @transform_1, window_bounds = array<i64: 128, 128>}, {pipeline_mode = #tpu.pipeline_mode<synchronous>, transform_indices = @transform_2, window_bounds = array<i64: 1, 128>}, {pipeline_mode = #tpu.pipeline_mode<synchronous>, transform_indices = @transform_3, window_bounds = array<i64: 128, 128>}, {pipeline_mode = #tpu.pipeline_mode<synchronous>, transform_indices = @transform_4, window_bounds = array<i64: 1, 128>}, {pipeline_mode = #tpu.pipeline_mode<synchronous>, transform_indices = @transform_5, window_bounds = array<i64: 128, 128>}, {pipeline_mode = #tpu.pipeline_mode<synchronous>, transform_indices = @transform_6, window_bounds = array<i64: 1, 128>}, {transform_indices = @transform_7, window_bounds = array<i64: 8, 128>}]} {
    %c0 = arith.constant 0 : index
    %c0_0 = arith.constant 0 : index
    %0 = vector.load %arg1[%c0, %c0_0] : memref<8x128xf32, #tpu.memory_space<vmem>>, vector<8x128xf32>
    %1 = arith.truncf %0 : vector<8x128xf32> to vector<8x128xbf16>
    %c0_1 = arith.constant 0 : index
    %c0_2 = arith.constant 0 : index
    %2 = vector.load %arg2[%c0_1, %c0_2] : memref<128x128xbf16, #tpu.memory_space<vmem>>, vector<128x128xbf16>
    %cst = arith.constant dense<0.000000e+00> : vector<8x128xf32>
    %3 = tpu.matmul %1, %2, %cst {dimension_numbers = #tpu.dot_dimension_numbers<[1], [0], [0], [1], [0, 0, 1, 1], [], []>} : vector<8x128xbf16>, vector<128x128xbf16>, vector<8x128xf32> -> vector<8x128xf32>
    %c0_3 = arith.constant 0 : index
    %c0_4 = arith.constant 0 : index
    %4 = vector.load %arg3[%c0_3, %c0_4] : memref<1x128xf32, #tpu.memory_space<vmem>>, vector<1x128xf32>
    %5 = vector.broadcast %4 : vector<1x128xf32> to vector<8x128xf32>
    %6 = arith.addf %3, %5 : vector<8x128xf32>
    %cst_5 = arith.constant 0.000000e+00 : f32
    %7 = vector.broadcast %cst_5 : f32 to vector<8x128xf32>
    %8 = arith.maximumf %6, %7 : vector<8x128xf32>
    %9 = arith.truncf %8 : vector<8x128xf32> to vector<8x128xbf16>
    %c0_6 = arith.constant 0 : index
    %c0_7 = arith.constant 0 : index
    %10 = vector.load %arg4[%c0_6, %c0_7] : memref<128x128xbf16, #tpu.memory_space<vmem>>, vector<128x128xbf16>
    %cst_8 = arith.constant dense<0.000000e+00> : vector<8x128xf32>
    %11 = tpu.matmul %9, %10, %cst_8 {dimension_numbers = #tpu.dot_dimension_numbers<[1], [0], [0], [1], [0, 0, 1, 1], [], []>} : vector<8x128xbf16>, vector<128x128xbf16>, vector<8x128xf32> -> vector<8x128xf32>
    %c0_9 = arith.constant 0 : index
    %c0_10 = arith.constant 0 : index
    %12 = vector.load %arg5[%c0_9, %c0_10] : memref<1x128xf32, #tpu.memory_space<vmem>>, vector<1x128xf32>
    %13 = vector.broadcast %12 : vector<1x128xf32> to vector<8x128xf32>
    %14 = arith.addf %11, %13 : vector<8x128xf32>
    %cst_11 = arith.constant 0.000000e+00 : f32
    %15 = vector.broadcast %cst_11 : f32 to vector<8x128xf32>
    %16 = arith.maximumf %14, %15 : vector<8x128xf32>
    %17 = arith.truncf %16 : vector<8x128xf32> to vector<8x128xbf16>
    %c0_12 = arith.constant 0 : index
    %c0_13 = arith.constant 0 : index
    %18 = vector.load %arg6[%c0_12, %c0_13] : memref<128x128xbf16, #tpu.memory_space<vmem>>, vector<128x128xbf16>
    %cst_14 = arith.constant dense<0.000000e+00> : vector<8x128xf32>
    %19 = tpu.matmul %17, %18, %cst_14 {dimension_numbers = #tpu.dot_dimension_numbers<[1], [0], [0], [1], [0, 0, 1, 1], [], []>} : vector<8x128xbf16>, vector<128x128xbf16>, vector<8x128xf32> -> vector<8x128xf32>
    %c0_15 = arith.constant 0 : index
    %c0_16 = arith.constant 0 : index
    %20 = vector.load %arg7[%c0_15, %c0_16] : memref<1x128xf32, #tpu.memory_space<vmem>>, vector<1x128xf32>
    %21 = vector.broadcast %20 : vector<1x128xf32> to vector<8x128xf32>
    %22 = arith.addf %19, %21 : vector<8x128xf32>
    %c0_17 = arith.constant 0 : index
    %c0_18 = arith.constant 0 : index
    %23 = vector.load %arg8[%c0_17, %c0_18] : memref<8x128xf32, #tpu.memory_space<vmem>>, vector<8x128xf32>
    tpu.vector_store %arg8[%c0_17, %c0_18], %22 {strides = array<i32>} : memref<8x128xf32, #tpu.memory_space<vmem>>, vector<8x128xf32>,
    return
  }
  func.func @transform_0(%arg0: i32) -> (i32, i32) {
    %c0_i32 = arith.constant 0 : i32
    %c0_i32_0 = arith.constant 0 : i32
    return %arg0, %c0_i32 : i32, i32
  }
  func.func @transform_1(%arg0: i32) -> (i32, i32) {
    %c0_i32 = arith.constant 0 : i32
    %c0_i32_0 = arith.constant 0 : i32
    %c0_i32_1 = arith.constant 0 : i32
    return %c0_i32, %c0_i32_0 : i32, i32
  }
  func.func @transform_2(%arg0: i32) -> (i32, i32) {
    %c0_i32 = arith.constant 0 : i32
    %c0_i32_0 = arith.constant 0 : i32
    %c0_i32_1 = arith.constant 0 : i32
    return %c0_i32, %c0_i32_0 : i32, i32
  }
  func.func @transform_3(%arg0: i32) -> (i32, i32) {
    %c0_i32 = arith.constant 0 : i32
    %c0_i32_0 = arith.constant 0 : i32
    %c0_i32_1 = arith.constant 0 : i32
    return %c0_i32, %c0_i32_0 : i32, i32
  }
  func.func @transform_4(%arg0: i32) -> (i32, i32) {
    %c0_i32 = arith.constant 0 : i32
    %c0_i32_0 = arith.constant 0 : i32
    %c0_i32_1 = arith.constant 0 : i32
    return %c0_i32, %c0_i32_0 : i32, i32
  }
  func.func @transform_5(%arg0: i32) -> (i32, i32) {
    %c0_i32 = arith.constant 0 : i32
    %c0_i32_0 = arith.constant 0 : i32
    %c0_i32_1 = arith.constant 0 : i32
    return %c0_i32, %c0_i32_0 : i32, i32
  }
  func.func @transform_6(%arg0: i32) -> (i32, i32) {
    %c0_i32 = arith.constant 0 : i32
    %c0_i32_0 = arith.constant 0 : i32
    %c0_i32_1 = arith.constant 0 : i32
    return %c0_i32, %c0_i32_0 : i32, i32
  }
  func.func @transform_7(%arg0: i32) -> (i32, i32) {
    %c0_i32 = arith.constant 0 : i32
    %c0_i32_0 = arith.constant 0 : i32
    return %arg0, %c0_i32 : i32, i32
  }
}

</mosaic_0001>

<llo_original>
// kernel: tpu_custom_call.1
$region0: #{tpu_custom_call.1}
  #allocation0 [shape = 'u32[]', space=smem, size = 0x4, offset = 0x4, fixed_abs, tag = 'smem constant byte address 0x4 - core index']
  #allocation1 [shape = 'u32[72,128]{1,0:T(1,128)}', space=vmem, size = 0x9000, scoped, tag = 'internal scratch']
  %s0 = inlined_call_operand.hbm [shape: f32[8,128], index: 0, kind: input, shape index: {}]
  %s1 = inlined_call_operand.hbm [shape: bf16[128,128], index: 1, kind: input, shape index: {}]
  %s2 = inlined_call_operand.vmem [shape: f32[1,128], index: 2, kind: input, shape index: {}]
  %s3 = inlined_call_operand.hbm [shape: bf16[128,128], index: 3, kind: input, shape index: {}]
  %s4 = inlined_call_operand.vmem [shape: f32[1,128], index: 4, kind: input, shape index: {}]
  %s5 = inlined_call_operand.hbm [shape: bf16[128,128], index: 5, kind: input, shape index: {}]
  %s6 = inlined_call_operand.vmem [shape: f32[1,128], index: 6, kind: input, shape index: {}]
  %s7 = inlined_call_operand.hbm [shape: f32[8,128], index: 7, kind: output, shape index: {}]
  %s8 = sld [smem:[#allocation0]]
  $region54: #{tpu_custom_call.1} parent=0
    _
  %s10 = ssub.s32 1, %s8
  %s11 = scalar_select 0, %s10, %s8
  $region1: #{tpu_custom_call.1} parent=0
    #allocation2 [shape = 'u8[4096]{0}', space=vmem, size = 0x1000, scoped, tag = 'input window, operand 0, single buffered']
    #allocation3 [shape = 's32[1]{0}', space=sflag, size = 0x4, scoped, tag = 'scoped memory for tpu_custom_call.1']
    #allocation4 [shape = 's32[1]{0}', space=sflag, size = 0x4, scoped, tag = 'scoped memory for tpu_custom_call.1']
    #allocation5 [shape = 'u8[32768]{0}', space=vmem, size = 0x8000, scoped, tag = 'input window, operand 1, single buffered']
    #allocation6 [shape = 's32[1]{0}', space=sflag, size = 0x4, scoped, tag = 'scoped memory for tpu_custom_call.1']
    #allocation7 [shape = 'u8[32768]{0}', space=vmem, size = 0x8000, scoped, tag = 'input window, operand 3, single buffered']
    #allocation8 [shape = 'u8[32768]{0}', space=vmem, size = 0x8000, scoped, tag = 'input window, operand 5, single buffered']
    #allocation9 [shape = 's32[1]{0}', space=sflag, size = 0x4, scoped, tag = 'scoped memory for tpu_custom_call.1']
    #allocation10 [shape = 'u8[4096]{0}', space=vmem, size = 0x1000, scoped, tag = 'output window, operand 0, single buffered']
    %12 = vsyncpa [#allocation3], 0
    %13 = vsyncpa [#allocation6], 0
    %14 = vsyncpa [#allocation9], 0
    %15 = vsyncpa [#allocation4], 0
    // Predicated region
    $region2: #{tpu_custom_call.1} parent=1 // pred_check
      _
    $region3: #{tpu_custom_call.1} parent=1 // pred_check_branch
      %17 = sbr.rel (0) target = $region5
    $region4: #{tpu_custom_call.1} parent=1 // pred_region
      %19 = vsyncadd [#allocation3], 0
      %s21 = sshll.u32 %s0, 4
      %s22 = int_to_ptr.hbm [resolvable:$true] %s21
      %s23 = sshll.u32 [#allocation2], 4
      %s24 = int_to_ptr.vmem [resolvable:$true] %s23
      %26 = dma.hbm_to_vmem [thread:$0]  %s22, 128, %s24, [#allocation3]
    $region5: #{tpu_custom_call.1} parent=1 // pred_fallthru
      _
    // Predicated region
    $region6: #{tpu_custom_call.1} parent=1 // pred_check
      _
    $region7: #{tpu_custom_call.1} parent=1 // pred_check_branch
      %28 = sbr.rel (0) target = $region9
    $region8: #{tpu_custom_call.1} parent=1 // pred_region
      %30 = vsyncadd [#allocation6], 0
      %s31 = sshll.u32 %s1, 4
      %s32 = int_to_ptr.hbm [resolvable:$true] %s31
      %s33 = sshll.u32 [#allocation5], 4
      %s34 = int_to_ptr.vmem [resolvable:$true] %s33
      %39 = dma.hbm_to_vmem [thread:$0]  %s32, 1024, %s34, [#allocation6], 64, 64, 4
    $region9: #{tpu_custom_call.1} parent=1 // pred_fallthru
      _
    // Predicated region
    $region10: #{tpu_custom_call.1} parent=1 // pred_check
      _
    $region11: #{tpu_custom_call.1} parent=1 // pred_check_branch
      %41 = sbr.rel (0) target = $region13
    $region12: #{tpu_custom_call.1} parent=1 // pred_region
      _
    $region13: #{tpu_custom_call.1} parent=1 // pred_fallthru
      _
    // Predicated region
    $region14: #{tpu_custom_call.1} parent=1 // pred_check
      _
    $region15: #{tpu_custom_call.1} parent=1 // pred_check_branch
      %43 = sbr.rel (0) target = $region17
    $region16: #{tpu_custom_call.1} parent=1 // pred_region
      %45 = vsyncadd [#allocation6], 0
      %s46 = sshll.u32 %s3, 4
      %s47 = int_to_ptr.hbm [resolvable:$true] %s46
      %s48 = sshll.u32 [#allocation7], 4
      %s49 = int_to_ptr.vmem [resolvable:$true] %s48
      %54 = dma.hbm_to_vmem [thread:$0]  %s47, 1024, %s49, [#allocation6], 64, 64, 4
    $region17: #{tpu_custom_call.1} parent=1 // pred_fallthru
      _
    // Predicated region
    $region18: #{tpu_custom_call.1} parent=1 // pred_check
      _
    $region19: #{tpu_custom_call.1} parent=1 // pred_check_branch
      %56 = sbr.rel (0) target = $region21
    $region20: #{tpu_custom_call.1} parent=1 // pred_region
      _
    $region21: #{tpu_custom_call.1} parent=1 // pred_fallthru
      _
    // Predicated region
    $region22: #{tpu_custom_call.1} parent=1 // pred_check
      _
    $region23: #{tpu_custom_call.1} parent=1 // pred_check_branch
      %58 = sbr.rel (0) target = $region25
    $region24: #{tpu_custom_call.1} parent=1 // pred_region
      %60 = vsyncadd [#allocation9], 0
      %s61 = sshll.u32 %s5, 4
      %s62 = int_to_ptr.hbm [resolvable:$true] %s61
      %s63 = sshll.u32 [#allocation8], 4
      %s64 = int_to_ptr.vmem [resolvable:$true] %s63
      %69 = dma.hbm_to_vmem [thread:$0]  %s62, 1024, %s64, [#allocation9], 64, 64, 4
    $region25: #{tpu_custom_call.1} parent=1 // pred_fallthru
      _
    // Predicated region
    $region26: #{tpu_custom_call.1} parent=1 // pred_check
      _
    $region27: #{tpu_custom_call.1} parent=1 // pred_check_branch
      %71 = sbr.rel (0) target = $region29
    $region28: #{tpu_custom_call.1} parent=1 // pred_region
      _
    $region29: #{tpu_custom_call.1} parent=1 // pred_fallthru
      _
    // Predicated region
    $region30: #{tpu_custom_call.1} parent=1 // pred_check
      _
    $region31: #{tpu_custom_call.1} parent=1 // pred_check_branch
      %73 = sbr.rel (0) target = $region33
    $region32: #{tpu_custom_call.1} parent=1 // pred_region
      %75 = dma.done [#allocation3], 128
    $region33: #{tpu_custom_call.1} parent=1 // pred_fallthru
      _
    // Predicated region
    $region34: #{tpu_custom_call.1} parent=1 // pred_check
      _
    $region35: #{tpu_custom_call.1} parent=1 // pred_check_branch
      %77 = sbr.rel (0) target = $region37
    $region36: #{tpu_custom_call.1} parent=1 // pred_region
      %79 = dma.done [#allocation6], 1024
    $region37: #{tpu_custom_call.1} parent=1 // pred_fallthru
      _
    // Predicated region
    $region38: #{tpu_custom_call.1} parent=1 // pred_check
      _
    $region39: #{tpu_custom_call.1} parent=1 // pred_check_branch
      %81 = sbr.rel (0) target = $region41
    $region40: #{tpu_custom_call.1} parent=1 // pred_region
      %83 = dma.done [#allocation6], 1024
    $region41: #{tpu_custom_call.1} parent=1 // pred_fallthru
      _
    // Predicated region
    $region42: #{tpu_custom_call.1} parent=1 // pred_check
      _
    $region43: #{tpu_custom_call.1} parent=1 // pred_check_branch
      %85 = sbr.rel (0) target = $region45
    $region44: #{tpu_custom_call.1} parent=1 // pred_region
      %87 = dma.done [#allocation9], 1024
    $region45: #{tpu_custom_call.1} parent=1 // pred_fallthru
      _
    %v88 = vld [vmem:[#allocation2] sm:$0xff]
    %v89 = vpack.c.bf16 %v88, %v88
    %v90 = vld [vmem:[#allocation5] sm:$0xf]
    %v91 = vld [vmem:[#allocation5 + $0x4] sm:$0xf]
    %v92 = vld [vmem:[#allocation5 + $0x8] sm:$0xf]
    %v93 = vld [vmem:[#allocation5 + $0xc] sm:$0xf]
    %v94 = vld [vmem:[#allocation5 + $0x10] sm:$0xf]
    %v95 = vld [vmem:[#allocation5 + $0x14] sm:$0xf]
    %v96 = vld [vmem:[#allocation5 + $0x18] sm:$0xf]
    %v97 = vld [vmem:[#allocation5 + $0x1c] sm:$0xf]
    %v98 = vld [vmem:[#allocation5 + $0x20] sm:$0xf]
    %v99 = vld [vmem:[#allocation5 + $0x24] sm:$0xf]
    %v100 = vld [vmem:[#allocation5 + $0x28] sm:$0xf]
    %v101 = vld [vmem:[#allocation5 + $0x2c] sm:$0xf]
    %v102 = vld [vmem:[#allocation5 + $0x30] sm:$0xf]
    %v103 = vld [vmem:[#allocation5 + $0x34] sm:$0xf]
    %v104 = vld [vmem:[#allocation5 + $0x38] sm:$0xf]
    %v105 = vld [vmem:[#allocation5 + $0x3c] sm:$0xf]
    %v106 = vld [vmem:[%s2] sm:$0x1]
    %v108 = vperm.slane %v106, 0
    %v126 = vunpack.c.l.b16 %v90
    %v127 = vunpack.c.l.b16 %v91
    %v128 = vunpack.c.l.b16 %v92
    %v129 = vunpack.c.l.b16 %v93
    %v130 = vunpack.c.l.b16 %v94
    %v131 = vunpack.c.l.b16 %v95
    %v132 = vunpack.c.l.b16 %v96
    %v133 = vunpack.c.l.b16 %v97
    %v134 = vunpack.c.l.b16 %v98
    %v135 = vunpack.c.l.b16 %v99
    %v136 = vunpack.c.l.b16 %v100
    %v137 = vunpack.c.l.b16 %v101
    %v138 = vunpack.c.l.b16 %v102
    %v139 = vunpack.c.l.b16 %v103
    %v140 = vunpack.c.l.b16 %v104
    %v141 = vunpack.c.l.b16 %v105
    %v142 = vpack.c.b16 %v127, %v126
    %v143 = vpack.c.b16 %v129, %v128
    %v144 = vpack.c.b16 %v131, %v130
    %v145 = vpack.c.b16 %v133, %v132
    %v146 = vpack.c.b16 %v135, %v134
    %v147 = vpack.c.b16 %v137, %v136
    %v148 = vpack.c.b16 %v139, %v138
    %v149 = vpack.c.b16 %v141, %v140
    %158 = vmatpush.bf16.msra.mxu0 %v149
    %159 = vmatpush.bf16.msra.mxu0 %v148
    %160 = vmatpush.bf16.msra.mxu0 %v147
    %161 = vmatpush.bf16.msra.mxu0 %v146
    %162 = vmatpush.bf16.msra.mxu0 %v145
    %163 = vmatpush.bf16.msra.mxu0 %v144
    %164 = vmatpush.bf16.msra.mxu0 %v143
    %165 = vmatpush.bf16.msra.mxu0 %v142
    %166 = vmatmul.bf16.gmra.mxu0 %v89
    %v167 = vpop.f32.mrf.mxu0
    %v168 = vadd.f32 %v108, %v167
    %v169 = vpop.f32.mrf.mxu0
    %170 = vdwg.mxu0
    %v171 = vmax.f32 %v168, 0.0
    %v172 = vpack.c.bf16 %v171, %v171
    %v173 = vld [vmem:[#allocation7] sm:$0xf]
    %v174 = vld [vmem:[#allocation7 + $0x4] sm:$0xf]
    %v175 = vld [vmem:[#allocation7 + $0x8] sm:$0xf]
    %v176 = vld [vmem:[#allocation7 + $0xc] sm:$0xf]
    %v177 = vld [vmem:[#allocation7 + $0x10] sm:$0xf]
    %v178 = vld [vmem:[#allocation7 + $0x14] sm:$0xf]
    %v179 = vld [vmem:[#allocation7 + $0x18] sm:$0xf]
    %v180 = vld [vmem:[#allocation7 + $0x1c] sm:$0xf]
    %v181 = vld [vmem:[#allocation7 + $0x20] sm:$0xf]
    %v182 = vld [vmem:[#allocation7 + $0x24] sm:$0xf]
    %v183 = vld [vmem:[#allocation7 + $0x28] sm:$0xf]
    %v184 = vld [vmem:[#allocation7 + $0x2c] sm:$0xf]
    %v185 = vld [vmem:[#allocation7 + $0x30] sm:$0xf]
    %v186 = vld [vmem:[#allocation7 + $0x34] sm:$0xf]
    %v187 = vld [vmem:[#allocation7 + $0x38] sm:$0xf]
    %v188 = vld [vmem:[#allocation7 + $0x3c] sm:$0xf]
    %v189 = vld [vmem:[%s4] sm:$0x1]
    %v191 = vperm.slane %v189, 0
    %v209 = vunpack.c.l.b16 %v173
    %v210 = vunpack.c.l.b16 %v174
    %v211 = vunpack.c.l.b16 %v175
    %v212 = vunpack.c.l.b16 %v176
    %v213 = vunpack.c.l.b16 %v177
    %v214 = vunpack.c.l.b16 %v178
    %v215 = vunpack.c.l.b16 %v179
    %v216 = vunpack.c.l.b16 %v180
    %v217 = vunpack.c.l.b16 %v181
    %v218 = vunpack.c.l.b16 %v182
    %v219 = vunpack.c.l.b16 %v183
    %v220 = vunpack.c.l.b16 %v184
    %v221 = vunpack.c.l.b16 %v185
    %v222 = vunpack.c.l.b16 %v186
    %v223 = vunpack.c.l.b16 %v187
    %v224 = vunpack.c.l.b16 %v188
    %v225 = vpack.c.b16 %v210, %v209
    %v226 = vpack.c.b16 %v212, %v211
    %v227 = vpack.c.b16 %v214, %v213
    %v228 = vpack.c.b16 %v216, %v215
    %v229 = vpack.c.b16 %v218, %v217
    %v230 = vpack.c.b16 %v220, %v219
    %v231 = vpack.c.b16 %v222, %v221
    %v232 = vpack.c.b16 %v224, %v223
    %241 = vmatpush.bf16.msra.mxu0 %v232
    %242 = vmatpush.bf16.msra.mxu0 %v231
    %243 = vmatpush.bf16.msra.mxu0 %v230
    %244 = vmatpush.bf16.msra.mxu0 %v229
    %245 = vmatpush.bf16.msra.mxu0 %v228
    %246 = vmatpush.bf16.msra.mxu0 %v227
    %247 = vmatpush.bf16.msra.mxu0 %v226
    %248 = vmatpush.bf16.msra.mxu0 %v225
    %249 = vmatmul.bf16.gmra.mxu0 %v172
    %v250 = vpop.f32.mrf.mxu0
    %v251 = vadd.f32 %v191, %v250
    %v252 = vpop.f32.mrf.mxu0
    %253 = vdwg.mxu0
    %v254 = vmax.f32 %v251, 0.0
    %v255 = vpack.c.bf16 %v254, %v254
    %v256 = vld [vmem:[#allocation8] sm:$0xf]
    %v257 = vld [vmem:[#allocation8 + $0x4] sm:$0xf]
    %v258 = vld [vmem:[#allocation8 + $0x8] sm:$0xf]
    %v259 = vld [vmem:[#allocation8 + $0xc] sm:$0xf]
    %v260 = vld [vmem:[#allocation8 + $0x10] sm:$0xf]
    %v261 = vld [vmem:[#allocation8 + $0x14] sm:$0xf]
    %v262 = vld [vmem:[#allocation8 + $0x18] sm:$0xf]
    %v263 = vld [vmem:[#allocation8 + $0x1c] sm:$0xf]
    %v264 = vld [vmem:[#allocation8 + $0x20] sm:$0xf]
    %v265 = vld [vmem:[#allocation8 + $0x24] sm:$0xf]
    %v266 = vld [vmem:[#allocation8 + $0x28] sm:$0xf]
    %v267 = vld [vmem:[#allocation8 + $0x2c] sm:$0xf]
    %v268 = vld [vmem:[#allocation8 + $0x30] sm:$0xf]
    %v269 = vld [vmem:[#allocation8 + $0x34] sm:$0xf]
    %v270 = vld [vmem:[#allocation8 + $0x38] sm:$0xf]
    %v271 = vld [vmem:[#allocation8 + $0x3c] sm:$0xf]
    %v272 = vld [vmem:[%s6] sm:$0x1]
    %v274 = vperm.slane %v272, 0
    %v292 = vunpack.c.l.b16 %v256
    %v293 = vunpack.c.l.b16 %v257
    %v294 = vunpack.c.l.b16 %v258
    %v295 = vunpack.c.l.b16 %v259
    %v296 = vunpack.c.l.b16 %v260
    %v297 = vunpack.c.l.b16 %v261
    %v298 = vunpack.c.l.b16 %v262
    %v299 = vunpack.c.l.b16 %v263
    %v300 = vunpack.c.l.b16 %v264
    %v301 = vunpack.c.l.b16 %v265
    %v302 = vunpack.c.l.b16 %v266
    %v303 = vunpack.c.l.b16 %v267
    %v304 = vunpack.c.l.b16 %v268
    %v305 = vunpack.c.l.b16 %v269
    %v306 = vunpack.c.l.b16 %v270
    %v307 = vunpack.c.l.b16 %v271
    %v308 = vpack.c.b16 %v293, %v292
    %v309 = vpack.c.b16 %v295, %v294
    %v310 = vpack.c.b16 %v297, %v296
    %v311 = vpack.c.b16 %v299, %v298
    %v312 = vpack.c.b16 %v301, %v300
    %v313 = vpack.c.b16 %v303, %v302
    %v314 = vpack.c.b16 %v305, %v304
    %v315 = vpack.c.b16 %v307, %v306
    %324 = vmatpush.bf16.msra.mxu0 %v315
    %325 = vmatpush.bf16.msra.mxu0 %v314
    %326 = vmatpush.bf16.msra.mxu0 %v313
    %327 = vmatpush.bf16.msra.mxu0 %v312
    %328 = vmatpush.bf16.msra.mxu0 %v311
    %329 = vmatpush.bf16.msra.mxu0 %v310
    %330 = vmatpush.bf16.msra.mxu0 %v309
    %331 = vmatpush.bf16.msra.mxu0 %v308
    %332 = vmatmul.bf16.gmra.mxu0 %v255
    %v333 = vpop.f32.mrf.mxu0
    %v334 = vadd.f32 %v274, %v333
    %v335 = vpop.f32.mrf.mxu0
    %336 = vdwg.mxu0
    %337 = vst [vmem:[#allocation10] sm:$0xff] %v334
    // Predicated region
    $region46: #{tpu_custom_call.1} parent=1 // pred_check
      _
    $region47: #{tpu_custom_call.1} parent=1 // pred_check_branch
      %339 = sbr.rel (0) target = $region49
    $region48: #{tpu_custom_call.1} parent=1 // pred_region
      %341 = vsyncadd [#allocation4], 0
      %s343 = sshll.u32 [#allocation10], 4
      %s344 = int_to_ptr.vmem [resolvable:$true] %s343
      %s345 = sshll.u32 %s7, 4
      %s346 = int_to_ptr.hbm [resolvable:$true] %s345
      %348 = dma.vmem_to_hbm [thread:$0]  %s344, 128, %s346, [#allocation4]
    $region49: #{tpu_custom_call.1} parent=1 // pred_fallthru
      _
    // Predicated region
    $region50: #{tpu_custom_call.1} parent=1 // pred_check
      _
    $region51: #{tpu_custom_call.1} parent=1 // pred_check_branch
      %350 = sbr.rel (0) target = $region53
    $region52: #{tpu_custom_call.1} parent=1 // pred_region
      %352 = dma.done [#allocation4], 128
    $region53: #{tpu_custom_call.1} parent=1 // pred_fallthru
      _
    %353 = vsyncpa [#allocation3], 1
    %354 = vsyncpa [#allocation6], 1
    %355 = vsyncpa [#allocation9], 1
    %356 = vsyncpa [#allocation4], 1

</llo_original>
